<compile_context>
chip_gen: v7x
topology: tpu7x:2x2x1
jax: 0.10.0
libtpu: 0.0.40
codegen_flags: <defaults>
</compile_context>

<pallas_src>
import jax
import jax.numpy as jnp
from jax import lax
from jax.experimental import pallas as pl
from jax.experimental.pallas import tpu as pltpu


def _codebook_kernel(x_ref, emb_ref, e2_ref, codes_ref, quant_ref):
    """One tile of rows: nearest-centroid search + embedding gather (one-hot matmul).

    x_ref:     (tm, D) float32   flattened input rows (blocked over the grid)
    emb_ref:   (K, D)  float32   normalized codebook (precomputed in wrapper,
                                 grid-invariant -> fetched once)
    e2_ref:    (1, K)  float32   per-centroid squared norms (precomputed)
    codes_ref: (1, tm) int32     argmin codes (lane-dense row)
    quant_ref: (tm, D) float32   decoded centroids
    """
    x = x_ref[...]                                   # (tm, D)
    emb = emb_ref[...]                               # (K, D)
    e2 = e2_ref[...]                                 # (1, K)

    # x @ emb^T on the MXU (contract last dims, no explicit transpose).
    xe = lax.dot_general(
        x, emb, (((1,), (1,)), ((), ())), preferred_element_type=jnp.float32
    )                                                # (tm, K)

    # Shifted squared distance: the row-constant ||x||^2 term is dropped since
    # it does not change the argmin.  NOTE: d2 may be negative; it is only ever
    # used for argmin, never for sqrt.
    d2 = e2 - 2.0 * xe                               # (tm, K)

    # argmin with first-occurrence tie-breaking (matches torch.argmin).
    K = d2.shape[-1]
    dmin = jnp.min(d2, axis=-1, keepdims=True)       # (tm, 1)
    col = lax.broadcasted_iota(jnp.int32, d2.shape, 1)
    codes = jnp.min(jnp.where(d2 == dmin, col, K), axis=-1)  # (tm,) int32

    # Lane-dense store of the codes row (full-lane vst).
    codes_ref[...] = codes[None, :].astype(jnp.int32)        # (1, tm)

    # decode: quantized = one_hot(codes) @ embedding (exact row gather on the MXU).
    onehot = (col == codes[:, None]).astype(jnp.float32)     # (tm, K)
    quant_ref[...] = jnp.dot(onehot, emb, preferred_element_type=jnp.float32)


def _round_up(v, m):
    return ((v + m - 1) // m) * m


def _vmem_capacity_bytes():
    """Physical per-TensorCore VMEM; conservative v7x fallback if unavailable."""
    try:
        return int(pltpu.get_tpu_info().vmem_capacity_bytes)
    except Exception:
        return 64 * 1024 * 1024


def _tile_footprint_bytes(tm, D, K):
    """Honest VMEM estimate for one grid step at row-tile size tm (f32 words)."""
    d_pad = max(_round_up(D, 128), 128)     # lane-padded layout in VMEM
    k_sub = max(_round_up(K, 8), 8)
    k_lane = max(_round_up(K, 128), 128)
    words = (
        2 * tm * d_pad                      # double-buffered x tiles
        + 2 * tm * d_pad                    # double-buffered quantized tiles
        + 2 * 8 * tm                        # double-buffered codes rows (sublane-padded)
        + 2 * (k_sub * d_pad + k_lane)      # codebook + e2 (pipeline keeps 2 buffers)
        + 5 * tm * k_lane                   # xe, d2, iota, where-result, one-hot
    )
    return 4 * words


def _pick_block_rows(N, D, K, requested, budget):
    if requested is not None:
        if requested % 128 != 0:
            raise ValueError("block_rows must be a multiple of 128")
        return requested
    cap_rows = max(128, _round_up(N, 128))  # never tile wider than the row count
    for cand in (1024, 512, 256, 128):
        tm = min(cand, cap_rows)
        if _tile_footprint_bytes(tm, D, K) <= budget:
            return tm
    return 128


def euclidean_codebook_forward(x, embedding_sum, cluster_usage, *, epsilon=1e-5,
                               block_rows=None):
    """Eval-mode forward of EuclideanCodebook: returns (quantized, codes).

    x:             (..., D) float
    embedding_sum: (K, D)   float   EMA sum buffer
    cluster_usage: (K,)     float   EMA cluster usage
    block_rows:    rows per grid step (multiple of 128). If None, the largest
                   of 1024/512/256/128 that fits the generation's VMEM budget
                   is chosen automatically.
    """
    lead = x.shape[:-1]
    D = x.shape[-1]
    K = embedding_sum.shape[0]

    # --- Hoisted, grid-invariant codebook math (done once, not per tile). ---
    usage = jnp.maximum(cluster_usage.astype(jnp.float32), jnp.float32(epsilon))
    emb = embedding_sum.astype(jnp.float32) / usage[:, None]          # (K, D)
    e2 = jnp.sum(emb * emb, axis=-1)[None, :]                         # (1, K)

    # No lane padding of D, no row padding of N (ragged last block is masked by
    # Pallas); the outputs below are exact-shape so no post-slice copy either.
    flat = x.reshape(-1, D)
    if flat.dtype != jnp.float32:
        flat = flat.astype(jnp.float32)
    N = flat.shape[0]

    cap = _vmem_capacity_bytes()
    budget = int(0.75 * cap)                 # ~96 MiB on v5e/v6e, ~48 MiB on v7x
    tm = _pick_block_rows(N, D, K, block_rows, budget)
    vmem_limit = int(min(max(int(1.25 * _tile_footprint_bytes(tm, D, K)),
                             32 * 1024 * 1024), budget))

    n_tiles = pl.cdiv(N, tm)

    codes_row, quantized = pl.pallas_call(
        _codebook_kernel,
        out_shape=(
            jax.ShapeDtypeStruct((1, N), jnp.int32),
            jax.ShapeDtypeStruct((N, D), jnp.float32),
        ),
        grid_spec=pltpu.PrefetchScalarGridSpec(
            num_scalar_prefetch=0,
            grid=(n_tiles,),
            in_specs=[
                pl.BlockSpec((tm, D), lambda i: (i, 0)),   # x row tiles
                pl.BlockSpec((K, D), lambda i: (0, 0)),    # full codebook (invariant)
                pl.BlockSpec((1, K), lambda i: (0, 0)),    # centroid norms (invariant)
            ],
            out_specs=[
                pl.BlockSpec((1, tm), lambda i: (0, i)),   # lane-dense codes row
                pl.BlockSpec((tm, D), lambda i: (i, 0)),   # quantized rows
            ],
        ),
        compiler_params=pltpu.CompilerParams(
            dimension_semantics=("parallel",),
            vmem_limit_bytes=vmem_limit,
        ),
    )(flat, emb, e2)

    codes = codes_row[0].reshape(lead)
    quantized = quantized.reshape(*lead, D)
    return quantized, codes


def _reference_forward(x, embedding_sum, cluster_usage, epsilon=1e-5):
    """Pure-JAX reference matching the PyTorch semantics (eval mode)."""
    D = x.shape[-1]
    flat = x.reshape(-1, D)
    emb = embedding_sum / jnp.maximum(cluster_usage, epsilon)[:, None]
    dists = jnp.sqrt(
        jnp.maximum(
            jnp.sum(flat**2, -1, keepdims=True)
            - 2.0 * flat @ emb.T
            + jnp.sum(emb**2, -1)[None, :],
            0.0,
        )
    )
    codes = jnp.argmin(dists, axis=-1)
    quant = emb[codes]
    return quant.reshape(x.shape), codes.reshape(x.shape[:-1])


if __name__ == "__main__":
    # Small, module-consistent shapes: batch=2, seq=8, dim=32, codebook_size=64.
    dim = 32
    codebook_size = 64
    key = jax.random.PRNGKey(0)
    k_x, k_emb, k_use = jax.random.split(key, 3)

    x = jax.random.normal(k_x, (2, 8, dim), dtype=jnp.float32)
    # Deterministic synthetic buffers (module __init__ zero-inits embedding_sum,
    # which would make all codes 0; use random values for a meaningful test).
    embedding_sum = jax.random.normal(k_emb, (codebook_size, dim), dtype=jnp.float32)
    cluster_usage = jax.random.uniform(
        k_use, (codebook_size,), dtype=jnp.float32, minval=0.5, maxval=2.0
    )

    # TODO(synk): training-only branches (k-means init, EMA buffer updates,
    # expired-code replacement, distributed broadcast, entropy metric) are
    # stateful/host-side and are not part of this eval-mode forward kernel.

    quantized, codes = euclidean_codebook_forward(x, embedding_sum, cluster_usage)
    jax.block_until_ready((quantized, codes))

    q_ref, c_ref = _reference_forward(x, embedding_sum, cluster_usage)
    assert codes.shape == (2, 8) and quantized.shape == (2, 8, dim)
    assert jnp.array_equal(codes, c_ref.astype(jnp.int32)), "codes mismatch"
    assert jnp.allclose(quantized, q_ref, atol=1e-5, rtol=1e-5), "quantized mismatch"

    print("KERNEL_OK")
</pallas_src>

<mosaic_0001>
module attributes {stable_mosaic.version = 11 : i64} {
  func.func @_codebook_kernel(%arg0: i32, %arg1: memref<128x32xf32, #tpu.memory_space<vmem>>, %arg2: memref<64x32xf32, #tpu.memory_space<vmem>>, %arg3: memref<1x64xf32, #tpu.memory_space<vmem>>, %arg4: memref<1x128xi32, #tpu.memory_space<vmem>>, %arg5: memref<128x32xf32, #tpu.memory_space<vmem>>) attributes {dimension_semantics = [#tpu.dimension_semantics<parallel>], iteration_bounds = array<i64: 1>, scalar_prefetch = 0 : i64, scratch_operands = 0 : i64, tpu.core_type = #tpu.core_type<tc>, window_params = [{transform_indices = @transform_0, window_bounds = array<i64: 128, 32>}, {pipeline_mode = #tpu.pipeline_mode<synchronous>, transform_indices = @transform_1, window_bounds = array<i64: 64, 32>}, {pipeline_mode = #tpu.pipeline_mode<synchronous>, transform_indices = @transform_2, window_bounds = array<i64: 1, 64>}, {transform_indices = @transform_3, window_bounds = array<i64: 1, 128>}, {transform_indices = @transform_4, window_bounds = array<i64: 128, 32>}]} {
    %c0 = arith.constant 0 : index
    %c0_0 = arith.constant 0 : index
    %0 = vector.load %arg1[%c0, %c0_0] : memref<128x32xf32, #tpu.memory_space<vmem>>, vector<128x32xf32>
    %c0_1 = arith.constant 0 : index
    %c0_2 = arith.constant 0 : index
    %1 = vector.load %arg2[%c0_1, %c0_2] : memref<64x32xf32, #tpu.memory_space<vmem>>, vector<64x32xf32>
    %c0_3 = arith.constant 0 : index
    %c0_4 = arith.constant 0 : index
    %2 = vector.load %arg3[%c0_3, %c0_4] : memref<1x64xf32, #tpu.memory_space<vmem>>, vector<1x64xf32>
    %cst = arith.constant dense<0.000000e+00> : vector<128x64xf32>
    %3 = tpu.matmul %0, %1, %cst {dimension_numbers = #tpu.dot_dimension_numbers<[1], [1], [0], [0], [0, 0, 1, 0], [], []>} : vector<128x32xf32>, vector<64x32xf32>, vector<128x64xf32> -> vector<128x64xf32>
    %cst_5 = arith.constant 2.000000e+00 : f32
    %4 = vector.broadcast %cst_5 : f32 to vector<128x64xf32>
    %5 = arith.mulf %4, %3 : vector<128x64xf32>
    %6 = vector.broadcast %2 : vector<1x64xf32> to vector<128x64xf32>
    %7 = arith.subf %6, %5 : vector<128x64xf32>
    %cst_6 = arith.constant dense<0x7F800000> : vector<128xf32>
    %8 = vector.multi_reduction <minimumf>, %7, %cst_6 [1] : vector<128x64xf32> to vector<128xf32>
    %9 = vector.shape_cast %8 : vector<128xf32> to vector<128x1xf32>
    %10 = tpu.iota {dimensions = array<i32: 1>} : vector<128x64xi32>
    %11 = vector.broadcast %9 : vector<128x1xf32> to vector<128x64xf32>
    %12 = arith.cmpf oeq, %7, %11 : vector<128x64xf32>
    %c64_i32 = arith.constant 64 : i32
    %13 = vector.broadcast %c64_i32 : i32 to vector<128x64xi32>
    %14 = arith.select %12, %10, %13 : vector<128x64xi1>, vector<128x64xi32>
    %cst_7 = arith.constant dense<2147483647> : vector<128xi32>
    %15 = vector.multi_reduction <minsi>, %14, %cst_7 [1] : vector<128x64xi32> to vector<128xi32>
    %16 = vector.shape_cast %15 : vector<128xi32> to vector<1x128xi32>
    %c0_8 = arith.constant 0 : index
    %c0_9 = arith.constant 0 : index
    %17 = vector.load %arg4[%c0_8, %c0_9] : memref<1x128xi32, #tpu.memory_space<vmem>>, vector<1x128xi32>
    tpu.vector_store %arg4[%c0_8, %c0_9], %16 {strides = array<i32>} : memref<1x128xi32, #tpu.memory_space<vmem>>, vector<1x128xi32>,
    %18 = vector.shape_cast %15 : vector<128xi32> to vector<128x1xi32>
    %19 = vector.broadcast %18 : vector<128x1xi32> to vector<128x64xi32>
    %20 = arith.cmpi eq, %10, %19 : vector<128x64xi32>
    %21 = arith.extui %20 : vector<128x64xi1> to vector<128x64xi32>
    %22 = arith.sitofp %21 : vector<128x64xi32> to vector<128x64xf32>
    %cst_10 = arith.constant dense<0.000000e+00> : vector<128x32xf32>
    %23 = tpu.matmul %22, %1, %cst_10 {dimension_numbers = #tpu.dot_dimension_numbers<[1], [0], [0], [1], [0, 0, 1, 1], [], []>} : vector<128x64xf32>, vector<64x32xf32>, vector<128x32xf32> -> vector<128x32xf32>
    %c0_11 = arith.constant 0 : index
    %c0_12 = arith.constant 0 : index
    %24 = vector.load %arg5[%c0_11, %c0_12] : memref<128x32xf32, #tpu.memory_space<vmem>>, vector<128x32xf32>
    tpu.vector_store %arg5[%c0_11, %c0_12], %23 {strides = array<i32>} : memref<128x32xf32, #tpu.memory_space<vmem>>, vector<128x32xf32>,
    return
  }
  func.func @transform_0(%arg0: i32) -> (i32, i32) {
    %c0_i32 = arith.constant 0 : i32
    %c0_i32_0 = arith.constant 0 : i32
    return %arg0, %c0_i32 : i32, i32
  }
  func.func @transform_1(%arg0: i32) -> (i32, i32) {
    %c0_i32 = arith.constant 0 : i32
    %c0_i32_0 = arith.constant 0 : i32
    %c0_i32_1 = arith.constant 0 : i32
    return %c0_i32, %c0_i32_0 : i32, i32
  }
  func.func @transform_2(%arg0: i32) -> (i32, i32) {
    %c0_i32 = arith.constant 0 : i32
    %c0_i32_0 = arith.constant 0 : i32
    %c0_i32_1 = arith.constant 0 : i32
    return %c0_i32, %c0_i32_0 : i32, i32
  }
  func.func @transform_3(%arg0: i32) -> (i32, i32) {
    %c0_i32 = arith.constant 0 : i32
    %c0_i32_0 = arith.constant 0 : i32
    return %c0_i32, %arg0 : i32, i32
  }
  func.func @transform_4(%arg0: i32) -> (i32, i32) {
    %c0_i32 = arith.constant 0 : i32
    %c0_i32_0 = arith.constant 0 : i32
    return %arg0, %c0_i32 : i32, i32
  }
}

</mosaic_0001>

<llo_original>
// kernel: tpu_custom_call.1
$region0: #{tpu_custom_call.1}
  #allocation0 [shape = 'u32[]', space=smem, size = 0x4, offset = 0x4, fixed_abs, tag = 'smem constant byte address 0x4 - core index']
  #allocation1 [shape = 'u32[144,128]{1,0:T(1,128)}', space=vmem, size = 0x12000, scoped, tag = 'internal scratch']
  %s0 = inlined_call_operand.vmem [shape: f32[16,32], index: 0, kind: input, shape index: {}]
  %s1 = inlined_call_operand.vmem [shape: f32[64,32], index: 1, kind: input, shape index: {}]
  %s2 = inlined_call_operand.vmem [shape: f32[1,64], index: 2, kind: input, shape index: {}]
  %s3 = inlined_call_operand.hbm [shape: s32[1,16], index: 3, kind: output, shape index: {0}]
  %s4 = inlined_call_operand.hbm [shape: f32[16,32], index: 4, kind: output, shape index: {1}]
  %5 = xla_tuple %s3, %s4
  %s6 = sld [smem:[#allocation0]]
  $region30: #{tpu_custom_call.1} parent=0
    _
  %s8 = ssub.s32 1, %s6
  %s9 = scalar_select 0, %s8, %s6
  $region1: #{tpu_custom_call.1} parent=0
    #allocation2 [shape = 'u8[512]{0}', space=vmem, size = 0x400, scoped, tag = 'output window, operand 0, single buffered']
    #allocation3 [shape = 's32[1]{0}', space=sflag, size = 0x4, scoped, tag = 'scoped memory for tpu_custom_call.1']
    #allocation4 [shape = 'u8[65536]{0}', space=vmem, size = 0x10000, scoped, tag = 'output window, operand 1, single buffered']
    #allocation5 [shape = 's32[1]{0}', space=sflag, size = 0x4, scoped, tag = 'scoped memory for tpu_custom_call.1']
    %10 = vsyncpa [#allocation3], 0
    %11 = vsyncpa [#allocation5], 0
    // Predicated region
    $region2: #{tpu_custom_call.1} parent=1 // pred_check
      _
    $region3: #{tpu_custom_call.1} parent=1 // pred_check_branch
      %13 = sbr.rel (0) target = $region5
    $region4: #{tpu_custom_call.1} parent=1 // pred_region
      _
    $region5: #{tpu_custom_call.1} parent=1 // pred_fallthru
      _
    // Predicated region
    $region6: #{tpu_custom_call.1} parent=1 // pred_check
      _
    $region7: #{tpu_custom_call.1} parent=1 // pred_check_branch
      %15 = sbr.rel (0) target = $region9
    $region8: #{tpu_custom_call.1} parent=1 // pred_region
      _
    $region9: #{tpu_custom_call.1} parent=1 // pred_fallthru
      _
    // Predicated region
    $region10: #{tpu_custom_call.1} parent=1 // pred_check
      _
    $region11: #{tpu_custom_call.1} parent=1 // pred_check_branch
      %17 = sbr.rel (0) target = $region13
    $region12: #{tpu_custom_call.1} parent=1 // pred_region
      _
    $region13: #{tpu_custom_call.1} parent=1 // pred_fallthru
      _
    %v18 = vld [vmem:[%s0] sm:$0xff]
    %v19 = vld [vmem:[%s0 + $0x8] sm:$0xff]
    %v20 = vld [vmem:[%s0 + $0x10] sm:$0xff]
    %v21 = vld [vmem:[%s0 + $0x18] sm:$0xff]
    %v22 = vld [vmem:[%s0 + $0x20] sm:$0xff]
    %v23 = vld [vmem:[%s0 + $0x28] sm:$0xff]
    %v24 = vld [vmem:[%s0 + $0x30] sm:$0xff]
    %v25 = vld [vmem:[%s0 + $0x38] sm:$0xff]
    %v26 = vld [vmem:[%s0 + $0x40] sm:$0xff]
    %v27 = vld [vmem:[%s0 + $0x48] sm:$0xff]
    %v28 = vld [vmem:[%s0 + $0x50] sm:$0xff]
    %v29 = vld [vmem:[%s0 + $0x58] sm:$0xff]
    %v30 = vld [vmem:[%s0 + $0x60] sm:$0xff]
    %v31 = vld [vmem:[%s0 + $0x68] sm:$0xff]
    %v32 = vld [vmem:[%s0 + $0x70] sm:$0xff]
    %v33 = vld [vmem:[%s0 + $0x78] sm:$0xff]
    %v34 = vld [vmem:[%s1] sm:$0xff]
    %v35 = vld [vmem:[%s1 + $0x8] sm:$0xff]
    %v36 = vld [vmem:[%s1 + $0x10] sm:$0xff]
    %v37 = vld [vmem:[%s1 + $0x18] sm:$0xff]
    %v38 = vld [vmem:[%s1 + $0x20] sm:$0xff]
    %v39 = vld [vmem:[%s1 + $0x28] sm:$0xff]
    %v40 = vld [vmem:[%s1 + $0x30] sm:$0xff]
    %v41 = vld [vmem:[%s1 + $0x38] sm:$0xff]
    %v42 = vld [vmem:[%s2] sm:$0x1]
    %vm43 = vcmask 261120
    %v45 = vsel %vm43, %v18, 0
    %v48 = vsel %vm43, %v19, 0
    %v51 = vsel %vm43, %v20, 0
    %v54 = vsel %vm43, %v21, 0
    %v57 = vsel %vm43, %v22, 0
    %v60 = vsel %vm43, %v23, 0
    %v63 = vsel %vm43, %v24, 0
    %v66 = vsel %vm43, %v25, 0
    %v69 = vsel %vm43, %v26, 0
    %v72 = vsel %vm43, %v27, 0
    %v75 = vsel %vm43, %v28, 0
    %v78 = vsel %vm43, %v29, 0
    %v81 = vsel %vm43, %v30, 0
    %v84 = vsel %vm43, %v31, 0
    %v87 = vsel %vm43, %v32, 0
    %v90 = vsel %vm43, %v33, 0
    %v93 = vsel %vm43, %v34, 0
    %v96 = vsel %vm43, %v35, 0
    %v99 = vsel %vm43, %v36, 0
    %v102 = vsel %vm43, %v37, 0
    %v105 = vsel %vm43, %v38, 0
    %v108 = vsel %vm43, %v39, 0
    %v111 = vsel %vm43, %v40, 0
    %v114 = vsel %vm43, %v41, 0
    %116 = vmatprep.subr.mxu0 0.0
    %117 = vmatpush1.xpose.msra.mxu0 %v93
    %118 = vmatprep.subr.mxu0 0.0
    %119 = vmatpush1.xpose.msra.mxu0 %v96
    %120 = vmatprep.subr.mxu0 0.0
    %121 = vmatpush1.xpose.msra.mxu0 %v99
    %122 = vmatprep.subr.mxu0 0.0
    %123 = vmatpush1.xpose.msra.mxu0 %v102
    %124 = vmatprep.subr.mxu0 0.0
    %125 = vmatpush1.xpose.msra.mxu0 %v105
    %126 = vmatprep.subr.mxu0 0.0
    %127 = vmatpush1.xpose.msra.mxu0 %v108
    %128 = vmatprep.subr.mxu0 0.0
    %129 = vmatpush1.xpose.msra.mxu0 %v111
    %130 = vmatprep.subr.mxu0 0.0
    %131 = vmatpush1.xpose.msra.mxu0 %v114
    %132 = vmatprep.subr.mxu0 0.0
    %133 = vmatpush1.xpose.msra.mxu0 0.0
    %134 = vmatprep.subr.mxu0 0.0
    %135 = vmatpush1.xpose.msra.mxu0 0.0
    %136 = vmatprep.subr.mxu0 0.0
    %137 = vmatpush1.xpose.msra.mxu0 0.0
    %138 = vmatprep.subr.mxu0 0.0
    %139 = vmatpush1.xpose.msra.mxu0 0.0
    %140 = vmatprep.subr.mxu0 0.0
    %141 = vmatpush1.xpose.msra.mxu0 0.0
    %142 = vmatprep.subr.mxu0 0.0
    %143 = vmatpush1.xpose.msra.mxu0 0.0
    %144 = vmatprep.subr.mxu0 0.0
    %145 = vmatpush1.xpose.msra.mxu0 0.0
    %146 = vmatprep.subr.mxu0 0.0
    %147 = vmatpush1.xpose.msra.mxu0 0.0
    %148 = vmatprep.subr.mxu0 0.0
    %149 = vmatpush1.xpose.msra.mxu0 0.0
    %150 = vmatprep.subr.mxu0 0.0
    %151 = vmatpush1.xpose.msra.mxu0 0.0
    %152 = vmatprep.subr.mxu0 0.0
    %153 = vmatpush1.xpose.msra.mxu0 0.0
    %154 = vmatprep.subr.mxu0 0.0
    %155 = vmatpush1.xpose.msra.mxu0 0.0
    %156 = vmatprep.subr.mxu0 0.0
    %157 = vmatpush1.xpose.msra.mxu0 0.0
    %158 = vmatprep.subr.mxu0 0.0
    %159 = vmatpush1.xpose.msra.mxu0 0.0
    %160 = vmatprep.subr.mxu0 0.0
    %161 = vmatpush1.xpose.msra.mxu0 0.0
    %162 = vmatprep.subr.mxu0 0.0
    %163 = vmatpush1.xpose.msra.mxu0 0.0
    %164 = vmatprep.subr.mxu0 0.0
    %165 = vmatpush1.xpose.msra.mxu0 0.0
    %166 = vmatprep.subr.mxu0 0.0
    %167 = vmatpush1.xpose.msra.mxu0 0.0
    %168 = vmatprep.subr.mxu0 0.0
    %169 = vmatpush1.xpose.msra.mxu0 0.0
    %170 = vmatprep.subr.mxu0 0.0
    %171 = vmatpush1.xpose.msra.mxu0 0.0
    %172 = vmatprep.subr.mxu0 0.0
    %173 = vmatpush1.xpose.msra.mxu0 0.0
    %174 = vmatprep.subr.mxu0 0.0
    %175 = vmatpush1.xpose.msra.mxu0 0.0
    %176 = vmatprep.subr.mxu0 0.0
    %177 = vmatpush1.xpose.msra.mxu0 0.0
    %178 = vmatprep.subr.mxu0 0.0
    %179 = vmatpush1.xpose.msra.mxu0 0.0
    %180 = vmatprep.mubr.f32.mxu0 0.0
    %181 = vmatmul.mubr.f32.gmra.mrb[0].mxu0 %v45
    %v182 = vpop.f32.mrb[0].mxu0
    %v183 = vadd.f32 0.0, %v182
    %v184 = vpop.f32.mrb[0].mxu0
    %185 = vmatprep.mubr.f32.mxu0 0.0
    %186 = vmatmul.mubr.f32.gmra.mrb[0].mxu0 %v48
    %v187 = vpop.f32.mrb[0].mxu0
    %v188 = vadd.f32 0.0, %v187
    %v189 = vpop.f32.mrb[0].mxu0
    %190 = vmatprep.mubr.f32.mxu0 0.0
    %191 = vmatmul.mubr.f32.gmra.mrb[0].mxu0 %v51
    %v192 = vpop.f32.mrb[0].mxu0
    %v193 = vadd.f32 0.0, %v192
    %v194 = vpop.f32.mrb[0].mxu0
    %195 = vmatprep.mubr.f32.mxu0 0.0
    %196 = vmatmul.mubr.f32.gmra.mrb[0].mxu0 %v54
    %v197 = vpop.f32.mrb[0].mxu0
    %v198 = vadd.f32 0.0, %v197
    %v199 = vpop.f32.mrb[0].mxu0
    %200 = vmatprep.mubr.f32.mxu0 0.0
    %201 = vmatmul.mubr.f32.gmra.mrb[0].mxu0 %v57
    %v202 = vpop.f32.mrb[0].mxu0
    %v203 = vadd.f32 0.0, %v202
    %v204 = vpop.f32.mrb[0].mxu0
    %205 = vmatprep.mubr.f32.mxu0 0.0
    %206 = vmatmul.mubr.f32.gmra.mrb[0].mxu0 %v60
    %v207 = vpop.f32.mrb[0].mxu0
    %v208 = vadd.f32 0.0, %v207
    %v209 = vpop.f32.mrb[0].mxu0
    %210 = vmatprep.mubr.f32.mxu0 0.0
    %211 = vmatmul.mubr.f32.gmra.mrb[0].mxu0 %v63
    %v212 = vpop.f32.mrb[0].mxu0
    %v213 = vadd.f32 0.0, %v212
    %v214 = vpop.f32.mrb[0].mxu0
    %215 = vmatprep.mubr.f32.mxu0 0.0
    %216 = vmatmul.mubr.f32.gmra.mrb[0].mxu0 %v66
    %v217 = vpop.f32.mrb[0].mxu0
    %v218 = vadd.f32 0.0, %v217
    %v219 = vpop.f32.mrb[0].mxu0
    %220 = vmatprep.mubr.f32.mxu0 0.0
    %221 = vmatmul.mubr.f32.gmra.mrb[0].mxu0 %v69
    %v222 = vpop.f32.mrb[0].mxu0
    %v223 = vadd.f32 0.0, %v222
    %v224 = vpop.f32.mrb[0].mxu0
    %225 = vmatprep.mubr.f32.mxu0 0.0
    %226 = vmatmul.mubr.f32.gmra.mrb[0].mxu0 %v72
    %v227 = vpop.f32.mrb[0].mxu0
    %v228 = vadd.f32 0.0, %v227
    %v229 = vpop.f32.mrb[0].mxu0
    %230 = vmatprep.mubr.f32.mxu0 0.0
    %231 = vmatmul.mubr.f32.gmra.mrb[0].mxu0 %v75
    %v232 = vpop.f32.mrb[0].mxu0
    %v233 = vadd.f32 0.0, %v232
    %v234 = vpop.f32.mrb[0].mxu0
    %235 = vmatprep.mubr.f32.mxu0 0.0
    %236 = vmatmul.mubr.f32.gmra.mrb[0].mxu0 %v78
    %v237 = vpop.f32.mrb[0].mxu0
    %v238 = vadd.f32 0.0, %v237
    %v239 = vpop.f32.mrb[0].mxu0
    %240 = vmatprep.mubr.f32.mxu0 0.0
    %241 = vmatmul.mubr.f32.gmra.mrb[0].mxu0 %v81
    %v242 = vpop.f32.mrb[0].mxu0
    %v243 = vadd.f32 0.0, %v242
    %v244 = vpop.f32.mrb[0].mxu0
    %245 = vmatprep.mubr.f32.mxu0 0.0
    %246 = vmatmul.mubr.f32.gmra.mrb[0].mxu0 %v84
    %v247 = vpop.f32.mrb[0].mxu0
    %v248 = vadd.f32 0.0, %v247
    %v249 = vpop.f32.mrb[0].mxu0
    %250 = vmatprep.mubr.f32.mxu0 0.0
    %251 = vmatmul.mubr.f32.gmra.mrb[0].mxu0 %v87
    %v252 = vpop.f32.mrb[0].mxu0
    %v253 = vadd.f32 0.0, %v252
    %v254 = vpop.f32.mrb[0].mxu0
    %255 = vmatprep.mubr.f32.mxu0 0.0
    %256 = vmatmul.mubr.f32.gmra.mrb[0].mxu0 %v90
    %v257 = vpop.f32.mrb[0].mxu0
    %v258 = vadd.f32 0.0, %v257
    %v259 = vpop.f32.mrb[0].mxu0
    %260 = vdwg.mxu0
    %v261 = vmul.f32 %v183, 2.0
    %v262 = vmul.f32 %v188, 2.0
    %v263 = vmul.f32 %v193, 2.0
    %v264 = vmul.f32 %v198, 2.0
    %v265 = vmul.f32 %v203, 2.0
    %v266 = vmul.f32 %v208, 2.0
    %v267 = vmul.f32 %v213, 2.0
    %v268 = vmul.f32 %v218, 2.0
    %v269 = vmul.f32 %v223, 2.0
    %v270 = vmul.f32 %v228, 2.0
    %v271 = vmul.f32 %v233, 2.0
    %v272 = vmul.f32 %v238, 2.0
    %v273 = vmul.f32 %v243, 2.0
    %v274 = vmul.f32 %v248, 2.0
    %v275 = vmul.f32 %v253, 2.0
    %v276 = vmul.f32 %v258, 2.0
    %v278 = vlaneseq
    %v279 = vshrl.u32 %v278, 7
    %v280 = vsub.s32 0, %v279
    %v281 = vrot.slane %v42, %v280
    %v283 = vsub.f32 %v281, %v261
    %v284 = vsub.f32 %v281, %v262
    %v285 = vsub.f32 %v281, %v263
    %v286 = vsub.f32 %v281, %v264
    %v287 = vsub.f32 %v281, %v265
    %v288 = vsub.f32 %v281, %v266
    %v289 = vsub.f32 %v281, %v267
    %v290 = vsub.f32 %v281, %v268
    %v291 = vsub.f32 %v281, %v269
    %v292 = vsub.f32 %v281, %v270
    %v293 = vsub.f32 %v281, %v271
    %v294 = vsub.f32 %v281, %v272
    %v295 = vsub.f32 %v281, %v273
    %v296 = vsub.f32 %v281, %v274
    %v297 = vsub.f32 %v281, %v275
    %v298 = vsub.f32 %v281, %v276
    %vm299 = vcmask 523264
    %v300 = vsel %vm299, %v283, inf
    %301 = vmin.xlane.f32.xlu0 %v300
    %v302 = vpop.xlane.xlu0 %301
    %v303 = vsel %vm299, %v284, inf
    %304 = vmin.xlane.f32.xlu0 %v303
    %v305 = vpop.xlane.xlu0 %304
    %v306 = vsel %vm299, %v285, inf
    %307 = vmin.xlane.f32.xlu0 %v306
    %v308 = vpop.xlane.xlu0 %307
    %v309 = vsel %vm299, %v286, inf
    %310 = vmin.xlane.f32.xlu0 %v309
    %v311 = vpop.xlane.xlu0 %310
    %v312 = vsel %vm299, %v287, inf
    %313 = vmin.xlane.f32.xlu0 %v312
    %v314 = vpop.xlane.xlu0 %313
    %v315 = vsel %vm299, %v288, inf
    %316 = vmin.xlane.f32.xlu0 %v315
    %v317 = vpop.xlane.xlu0 %316
    %v318 = vsel %vm299, %v289, inf
    %319 = vmin.xlane.f32.xlu0 %v318
    %v320 = vpop.xlane.xlu0 %319
    %v321 = vsel %vm299, %v290, inf
    %322 = vmin.xlane.f32.xlu0 %v321
    %v323 = vpop.xlane.xlu0 %322
    %v324 = vsel %vm299, %v291, inf
    %325 = vmin.xlane.f32.xlu0 %v324
    %v326 = vpop.xlane.xlu0 %325
    %v327 = vsel %vm299, %v292, inf
    %328 = vmin.xlane.f32.xlu0 %v327
    %v329 = vpop.xlane.xlu0 %328
    %v330 = vsel %vm299, %v293, inf
    %331 = vmin.xlane.f32.xlu0 %v330
    %v332 = vpop.xlane.xlu0 %331
    %v333 = vsel %vm299, %v294, inf
    %334 = vmin.xlane.f32.xlu0 %v333
    %v335 = vpop.xlane.xlu0 %334
    %v336 = vsel %vm299, %v295, inf
    %337 = vmin.xlane.f32.xlu0 %v336
    %v338 = vpop.xlane.xlu0 %337
    %v339 = vsel %vm299, %v296, inf
    %340 = vmin.xlane.f32.xlu0 %v339
    %v341 = vpop.xlane.xlu0 %340
    %v342 = vsel %vm299, %v297, inf
    %343 = vmin.xlane.f32.xlu0 %v342
    %v344 = vpop.xlane.xlu0 %343
    %v345 = vsel %vm299, %v298, inf
    %346 = vmin.xlane.f32.xlu0 %v345
    %v347 = vpop.xlane.xlu0 %346
    %v348 = vlaneseq
    %v349 = vand.u32 %v348, 127
    %vm350 = vcmp.eq.f32.partialorder %v283, %v302
    %vm351 = vcmp.eq.f32.partialorder %v284, %v305
    %vm352 = vcmp.eq.f32.partialorder %v285, %v308
    %vm353 = vcmp.eq.f32.partialorder %v286, %v311
    %vm354 = vcmp.eq.f32.partialorder %v287, %v314
    %vm355 = vcmp.eq.f32.partialorder %v288, %v317
    %vm356 = vcmp.eq.f32.partialorder %v289, %v320
    %vm357 = vcmp.eq.f32.partialorder %v290, %v323
    %vm358 = vcmp.eq.f32.partialorder %v291, %v326
    %vm359 = vcmp.eq.f32.partialorder %v292, %v329
    %vm360 = vcmp.eq.f32.partialorder %v293, %v332
    %vm361 = vcmp.eq.f32.partialorder %v294, %v335
    %vm362 = vcmp.eq.f32.partialorder %v295, %v338
    %vm363 = vcmp.eq.f32.partialorder %v296, %v341
    %vm364 = vcmp.eq.f32.partialorder %v297, %v344
    %vm365 = vcmp.eq.f32.partialorder %v298, %v347
    %v366 = vsel %vm350, %v349, 64
    %v367 = vsel %vm351, %v349, 64
    %v368 = vsel %vm352, %v349, 64
    %v369 = vsel %vm353, %v349, 64
    %v370 = vsel %vm354, %v349, 64
    %v371 = vsel %vm355, %v349, 64
    %v372 = vsel %vm356, %v349, 64
    %v373 = vsel %vm357, %v349, 64
    %v374 = vsel %vm358, %v349, 64
    %v375 = vsel %vm359, %v349, 64
    %v376 = vsel %vm360, %v349, 64
    %v377 = vsel %vm361, %v349, 64
    %v378 = vsel %vm362, %v349, 64
    %v379 = vsel %vm363, %v349, 64
    %v380 = vsel %vm364, %v349, 64
    %v381 = vsel %vm365, %v349, 64
    %v382 = vsel %vm299, %v366, 2147483647
    %v383 = vand.u32 %v382, 65535
    %v384 = vshra.s32 %v382, 16
    %v385 = vcvt.s32.f32 %v383
    %v386 = vcvt.s32.f32 %v384
    %387 = vmin.xlane.f32.xlu0 %v386
    %v388 = vpop.xlane.xlu0 %387
    %vm389 = vcmp.eq.f32.partialorder %v386, %v388
    %v390 = vsel %vm389, %v385, inf
    %391 = vmin.xlane.f32.xlu0 %v390
    %v392 = vpop.xlane.xlu0 %391
    %v393 = vcvt.f32.s32 %v392
    %v394 = vcvt.f32.s32 %v388
    %v395 = vshll.u32 %v394, 16
    %v396 = vadd.s32 %v395, %v393
    %v397 = vsel %vm299, %v367, 2147483647
    %v398 = vand.u32 %v397, 65535
    %v399 = vshra.s32 %v397, 16
    %v400 = vcvt.s32.f32 %v398
    %v401 = vcvt.s32.f32 %v399
    %402 = vmin.xlane.f32.xlu0 %v401
    %v403 = vpop.xlane.xlu0 %402
    %vm404 = vcmp.eq.f32.partialorder %v401, %v403
    %v405 = vsel %vm404, %v400, inf
    %406 = vmin.xlane.f32.xlu0 %v405
    %v407 = vpop.xlane.xlu0 %406
    %v408 = vcvt.f32.s32 %v407
    %v409 = vcvt.f32.s32 %v403
    %v410 = vshll.u32 %v409, 16
    %v411 = vadd.s32 %v410, %v408
    %v412 = vsel %vm299, %v368, 2147483647
    %v413 = vand.u32 %v412, 65535
    %v414 = vshra.s32 %v412, 16
    %v415 = vcvt.s32.f32 %v413
    %v416 = vcvt.s32.f32 %v414
    %417 = vmin.xlane.f32.xlu0 %v416
    %v418 = vpop.xlane.xlu0 %417
    %vm419 = vcmp.eq.f32.partialorder %v416, %v418
    %v420 = vsel %vm419, %v415, inf
    %421 = vmin.xlane.f32.xlu0 %v420
    %v422 = vpop.xlane.xlu0 %421
    %v423 = vcvt.f32.s32 %v422
    %v424 = vcvt.f32.s32 %v418
    %v425 = vshll.u32 %v424, 16
    %v426 = vadd.s32 %v425, %v423
    %v427 = vsel %vm299, %v369, 2147483647
    %v428 = vand.u32 %v427, 65535
    %v429 = vshra.s32 %v427, 16
    %v430 = vcvt.s32.f32 %v428
    %v431 = vcvt.s32.f32 %v429
    %432 = vmin.xlane.f32.xlu0 %v431
    %v433 = vpop.xlane.xlu0 %432
    %vm434 = vcmp.eq.f32.partialorder %v431, %v433
    %v435 = vsel %vm434, %v430, inf
    %436 = vmin.xlane.f32.xlu0 %v435
    %v437 = vpop.xlane.xlu0 %436
    %v438 = vcvt.f32.s32 %v437
    %v439 = vcvt.f32.s32 %v433
    %v440 = vshll.u32 %v439, 16
    %v441 = vadd.s32 %v440, %v438
    %v442 = vsel %vm299, %v370, 2147483647
    %v443 = vand.u32 %v442, 65535
    %v444 = vshra.s32 %v442, 16
    %v445 = vcvt.s32.f32 %v443
    %v446 = vcvt.s32.f32 %v444
    %447 = vmin.xlane.f32.xlu0 %v446
    %v448 = vpop.xlane.xlu0 %447
    %vm449 = vcmp.eq.f32.partialorder %v446, %v448
    %v450 = vsel %vm449, %v445, inf
    %451 = vmin.xlane.f32.xlu0 %v450
    %v452 = vpop.xlane.xlu0 %451
    %v453 = vcvt.f32.s32 %v452
    %v454 = vcvt.f32.s32 %v448
    %v455 = vshll.u32 %v454, 16
    %v456 = vadd.s32 %v455, %v453
    %v457 = vsel %vm299, %v371, 2147483647
    %v458 = vand.u32 %v457, 65535
    %v459 = vshra.s32 %v457, 16
    %v460 = vcvt.s32.f32 %v458
    %v461 = vcvt.s32.f32 %v459
    %462 = vmin.xlane.f32.xlu0 %v461
    %v463 = vpop.xlane.xlu0 %462
    %vm464 = vcmp.eq.f32.partialorder %v461, %v463
    %v465 = vsel %vm464, %v460, inf
    %466 = vmin.xlane.f32.xlu0 %v465
    %v467 = vpop.xlane.xlu0 %466
    %v468 = vcvt.f32.s32 %v467
    %v469 = vcvt.f32.s32 %v463
    %v470 = vshll.u32 %v469, 16
    %v471 = vadd.s32 %v470, %v468
    %v472 = vsel %vm299, %v372, 2147483647
    %v473 = vand.u32 %v472, 65535
    %v474 = vshra.s32 %v472, 16
    %v475 = vcvt.s32.f32 %v473
    %v476 = vcvt.s32.f32 %v474
    %477 = vmin.xlane.f32.xlu0 %v476
    %v478 = vpop.xlane.xlu0 %477
    %vm479 = vcmp.eq.f32.partialorder %v476, %v478
    %v480 = vsel %vm479, %v475, inf
    %481 = vmin.xlane.f32.xlu0 %v480
    %v482 = vpop.xlane.xlu0 %481
    %v483 = vcvt.f32.s32 %v482
    %v484 = vcvt.f32.s32 %v478
    %v485 = vshll.u32 %v484, 16
    %v486 = vadd.s32 %v485, %v483
    %v487 = vsel %vm299, %v373, 2147483647
    %v488 = vand.u32 %v487, 65535
    %v489 = vshra.s32 %v487, 16
    %v490 = vcvt.s32.f32 %v488
    %v491 = vcvt.s32.f32 %v489
    %492 = vmin.xlane.f32.xlu0 %v491
    %v493 = vpop.xlane.xlu0 %492
    %vm494 = vcmp.eq.f32.partialorder %v491, %v493
    %v495 = vsel %vm494, %v490, inf
    %496 = vmin.xlane.f32.xlu0 %v495
    %v497 = vpop.xlane.xlu0 %496
    %v498 = vcvt.f32.s32 %v497
    %v499 = vcvt.f32.s32 %v493
    %v500 = vshll.u32 %v499, 16
    %v501 = vadd.s32 %v500, %v498
    %v502 = vsel %vm299, %v374, 2147483647
    %v503 = vand.u32 %v502, 65535
    %v504 = vshra.s32 %v502, 16
    %v505 = vcvt.s32.f32 %v503
    %v506 = vcvt.s32.f32 %v504
    %507 = vmin.xlane.f32.xlu0 %v506
    %v508 = vpop.xlane.xlu0 %507
    %vm509 = vcmp.eq.f32.partialorder %v506, %v508
    %v510 = vsel %vm509, %v505, inf
    %511 = vmin.xlane.f32.xlu0 %v510
    %v512 = vpop.xlane.xlu0 %511
    %v513 = vcvt.f32.s32 %v512
    %v514 = vcvt.f32.s32 %v508
    %v515 = vshll.u32 %v514, 16
    %v516 = vadd.s32 %v515, %v513
    %v517 = vsel %vm299, %v375, 2147483647
    %v518 = vand.u32 %v517, 65535
    %v519 = vshra.s32 %v517, 16
    %v520 = vcvt.s32.f32 %v518
    %v521 = vcvt.s32.f32 %v519
    %522 = vmin.xlane.f32.xlu0 %v521
    %v523 = vpop.xlane.xlu0 %522
    %vm524 = vcmp.eq.f32.partialorder %v521, %v523
    %v525 = vsel %vm524, %v520, inf
    %526 = vmin.xlane.f32.xlu0 %v525
    %v527 = vpop.xlane.xlu0 %526
    %v528 = vcvt.f32.s32 %v527
    %v529 = vcvt.f32.s32 %v523
    %v530 = vshll.u32 %v529, 16
    %v531 = vadd.s32 %v530, %v528
    %v532 = vsel %vm299, %v376, 2147483647
    %v533 = vand.u32 %v532, 65535
    %v534 = vshra.s32 %v532, 16
    %v535 = vcvt.s32.f32 %v533
    %v536 = vcvt.s32.f32 %v534
    %537 = vmin.xlane.f32.xlu0 %v536
    %v538 = vpop.xlane.xlu0 %537
    %vm539 = vcmp.eq.f32.partialorder %v536, %v538
    %v540 = vsel %vm539, %v535, inf
    %541 = vmin.xlane.f32.xlu0 %v540
    %v542 = vpop.xlane.xlu0 %541
    %v543 = vcvt.f32.s32 %v542
    %v544 = vcvt.f32.s32 %v538
    %v545 = vshll.u32 %v544, 16
    %v546 = vadd.s32 %v545, %v543
    %v547 = vsel %vm299, %v377, 2147483647
    %v548 = vand.u32 %v547, 65535
    %v549 = vshra.s32 %v547, 16
    %v550 = vcvt.s32.f32 %v548
    %v551 = vcvt.s32.f32 %v549
    %552 = vmin.xlane.f32.xlu0 %v551
    %v553 = vpop.xlane.xlu0 %552
    %vm554 = vcmp.eq.f32.partialorder %v551, %v553
    %v555 = vsel %vm554, %v550, inf
    %556 = vmin.xlane.f32.xlu0 %v555
    %v557 = vpop.xlane.xlu0 %556
    %v558 = vcvt.f32.s32 %v557
    %v559 = vcvt.f32.s32 %v553
    %v560 = vshll.u32 %v559, 16
    %v561 = vadd.s32 %v560, %v558
    %v562 = vsel %vm299, %v378, 2147483647
    %v563 = vand.u32 %v562, 65535
    %v564 = vshra.s32 %v562, 16
    %v565 = vcvt.s32.f32 %v563
    %v566 = vcvt.s32.f32 %v564
    %567 = vmin.xlane.f32.xlu0 %v566
    %v568 = vpop.xlane.xlu0 %567
    %vm569 = vcmp.eq.f32.partialorder %v566, %v568
    %v570 = vsel %vm569, %v565, inf
    %571 = vmin.xlane.f32.xlu0 %v570
    %v572 = vpop.xlane.xlu0 %571
    %v573 = vcvt.f32.s32 %v572
    %v574 = vcvt.f32.s32 %v568
    %v575 = vshll.u32 %v574, 16
    %v576 = vadd.s32 %v575, %v573
    %v577 = vsel %vm299, %v379, 2147483647
    %v578 = vand.u32 %v577, 65535
    %v579 = vshra.s32 %v577, 16
    %v580 = vcvt.s32.f32 %v578
    %v581 = vcvt.s32.f32 %v579
    %582 = vmin.xlane.f32.xlu0 %v581
    %v583 = vpop.xlane.xlu0 %582
    %vm584 = vcmp.eq.f32.partialorder %v581, %v583
    %v585 = vsel %vm584, %v580, inf
    %586 = vmin.xlane.f32.xlu0 %v585
    %v587 = vpop.xlane.xlu0 %586
    %v588 = vcvt.f32.s32 %v587
    %v589 = vcvt.f32.s32 %v583
    %v590 = vshll.u32 %v589, 16
    %v591 = vadd.s32 %v590, %v588
    %v592 = vsel %vm299, %v380, 2147483647
    %v593 = vand.u32 %v592, 65535
    %v594 = vshra.s32 %v592, 16
    %v595 = vcvt.s32.f32 %v593
    %v596 = vcvt.s32.f32 %v594
    %597 = vmin.xlane.f32.xlu0 %v596
    %v598 = vpop.xlane.xlu0 %597
    %vm599 = vcmp.eq.f32.partialorder %v596, %v598
    %v600 = vsel %vm599, %v595, inf
    %601 = vmin.xlane.f32.xlu0 %v600
    %v602 = vpop.xlane.xlu0 %601
    %v603 = vcvt.f32.s32 %v602
    %v604 = vcvt.f32.s32 %v598
    %v605 = vshll.u32 %v604, 16
    %v606 = vadd.s32 %v605, %v603
    %v607 = vsel %vm299, %v381, 2147483647
    %v608 = vand.u32 %v607, 65535
    %v609 = vshra.s32 %v607, 16
    %v610 = vcvt.s32.f32 %v608
    %v611 = vcvt.s32.f32 %v609
    %612 = vmin.xlane.f32.xlu0 %v611
    %v613 = vpop.xlane.xlu0 %612
    %vm614 = vcmp.eq.f32.partialorder %v611, %v613
    %v615 = vsel %vm614, %v610, inf
    %616 = vmin.xlane.f32.xlu0 %v615
    %v617 = vpop.xlane.xlu0 %616
    %v618 = vcvt.f32.s32 %v617
    %v619 = vcvt.f32.s32 %v613
    %v620 = vshll.u32 %v619, 16
    %v621 = vadd.s32 %v620, %v618
    %v622 = vlaneseq
    %v623 = vshrl.u32 %v622, 7
    %v624 = vsub.s32 %v349, %v623
    %v625 = vrot.slane %v396, %v624
    %v626 = vadd.s32 %v349, 4294967288
    %v627 = vlaneseq
    %v628 = vshrl.u32 %v627, 7
    %v629 = vsub.s32 %v626, %v628
    %v630 = vrot.slane %v411, %v629
    %vm631 = vcmask 130112
    %v632 = vsel %vm631, %v630, %v625
    %v633 = vadd.s32 %v349, 4294967280
    %v634 = vlaneseq
    %v635 = vshrl.u32 %v634, 7
    %v636 = vsub.s32 %v633, %v635
    %v637 = vrot.slane %v426, %v636
    %vm638 = vcmask 195712
    %v639 = vsel %vm638, %v637, %v632
    %v640 = vadd.s32 %v349, 4294967272
    %v641 = vlaneseq
    %v642 = vshrl.u32 %v641, 7
    %v643 = vsub.s32 %v640, %v642
    %v644 = vrot.slane %v441, %v643
    %vm645 = vcmask 261312
    %v646 = vsel %vm645, %v644, %v639
    %v647 = vadd.s32 %v349, 4294967264
    %v648 = vlaneseq
    %v649 = vshrl.u32 %v648, 7
    %v650 = vsub.s32 %v647, %v649
    %v651 = vrot.slane %v456, %v650
    %vm652 = vcmask 326912
    %v653 = vsel %vm652, %v651, %v646
    %v654 = vadd.s32 %v349, 4294967256
    %v655 = vlaneseq
    %v656 = vshrl.u32 %v655, 7
    %v657 = vsub.s32 %v654, %v656
    %v658 = vrot.slane %v471, %v657
    %vm659 = vcmask 392512
    %v660 = vsel %vm659, %v658, %v653
    %v661 = vadd.s32 %v349, 4294967248
    %v662 = vlaneseq
    %v663 = vshrl.u32 %v662, 7
    %v664 = vsub.s32 %v661, %v663
    %v665 = vrot.slane %v486, %v664
    %vm666 = vcmask 458112
    %v667 = vsel %vm666, %v665, %v660
    %v668 = vadd.s32 %v349, 4294967240
    %v669 = vlaneseq
    %v670 = vshrl.u32 %v669, 7
    %v671 = vsub.s32 %v668, %v670
    %v672 = vrot.slane %v501, %v671
    %vm673 = vcmask 523712
    %v674 = vsel %vm673, %v672, %v667
    %v675 = vadd.s32 %v349, 4294967232
    %v676 = vlaneseq
    %v677 = vshrl.u32 %v676, 7
    %v678 = vsub.s32 %v675, %v677
    %v679 = vrot.slane %v516, %v678
    %vm680 = vcmask 589312
    %v681 = vsel %vm680, %v679, %v674
    %v682 = vadd.s32 %v349, 4294967224
    %v683 = vlaneseq
    %v684 = vshrl.u32 %v683, 7
    %v685 = vsub.s32 %v682, %v684
    %v686 = vrot.slane %v531, %v685
    %vm687 = vcmask 654912
    %v688 = vsel %vm687, %v686, %v681
    %v689 = vadd.s32 %v349, 4294967216
    %v690 = vlaneseq
    %v691 = vshrl.u32 %v690, 7
    %v692 = vsub.s32 %v689, %v691
    %v693 = vrot.slane %v546, %v692
    %vm694 = vcmask 720512
    %v695 = vsel %vm694, %v693, %v688
    %v696 = vadd.s32 %v349, 4294967208
    %v697 = vlaneseq
    %v698 = vshrl.u32 %v697, 7
    %v699 = vsub.s32 %v696, %v698
    %v700 = vrot.slane %v561, %v699
    %vm701 = vcmask 786112
    %v702 = vsel %vm701, %v700, %v695
    %v703 = vadd.s32 %v349, 4294967200
    %v704 = vlaneseq
    %v705 = vshrl.u32 %v704, 7
    %v706 = vsub.s32 %v703, %v705
    %v707 = vrot.slane %v576, %v706
    %vm708 = vcmask 851712
    %v709 = vsel %vm708, %v707, %v702
    %v710 = vadd.s32 %v349, 4294967192
    %v711 = vlaneseq
    %v712 = vshrl.u32 %v711, 7
    %v713 = vsub.s32 %v710, %v712
    %v714 = vrot.slane %v591, %v713
    %vm715 = vcmask 917312
    %v716 = vsel %vm715, %v714, %v709
    %v717 = vadd.s32 %v349, 4294967184
    %v718 = vlaneseq
    %v719 = vshrl.u32 %v718, 7
    %v720 = vsub.s32 %v717, %v719
    %v721 = vrot.slane %v606, %v720
    %vm722 = vcmask 982912
    %v723 = vsel %vm722, %v721, %v716
    %v724 = vadd.s32 %v349, 4294967176
    %v725 = vlaneseq
    %v726 = vshrl.u32 %v725, 7
    %v727 = vsub.s32 %v724, %v726
    %v728 = vrot.slane %v621, %v727
    %vm729 = vcmask 1048512
    %v730 = vsel %vm729, %v728, %v723
    %731 = vst [vmem:[#allocation2] sm:$0x1] %v730
    %vm732 = vcmp.eq.s32.totalorder %v349, %v396
    %vm733 = vcmp.eq.s32.totalorder %v349, %v411
    %vm734 = vcmp.eq.s32.totalorder %v349, %v426
    %vm735 = vcmp.eq.s32.totalorder %v349, %v441
    %vm736 = vcmp.eq.s32.totalorder %v349, %v456
    %vm737 = vcmp.eq.s32.totalorder %v349, %v471
    %vm738 = vcmp.eq.s32.totalorder %v349, %v486
    %vm739 = vcmp.eq.s32.totalorder %v349, %v501
    %vm740 = vcmp.eq.s32.totalorder %v349, %v516
    %vm741 = vcmp.eq.s32.totalorder %v349, %v531
    %vm742 = vcmp.eq.s32.totalorder %v349, %v546
    %vm743 = vcmp.eq.s32.totalorder %v349, %v561
    %vm744 = vcmp.eq.s32.totalorder %v349, %v576
    %vm745 = vcmp.eq.s32.totalorder %v349, %v591
    %vm746 = vcmp.eq.s32.totalorder %v349, %v606
    %vm747 = vcmp.eq.s32.totalorder %v349, %v621
    %v748 = vsel %vm732, 1, 0
    %v749 = vsel %vm733, 1, 0
    %v750 = vsel %vm734, 1, 0
    %v751 = vsel %vm735, 1, 0
    %v752 = vsel %vm736, 1, 0
    %v753 = vsel %vm737, 1, 0
    %v754 = vsel %vm738, 1, 0
    %v755 = vsel %vm739, 1, 0
    %v756 = vsel %vm740, 1, 0
    %v757 = vsel %vm741, 1, 0
    %v758 = vsel %vm742, 1, 0
    %v759 = vsel %vm743, 1, 0
    %v760 = vsel %vm744, 1, 0
    %v761 = vsel %vm745, 1, 0
    %v762 = vsel %vm746, 1, 0
    %v763 = vsel %vm747, 1, 0
    %v764 = vcvt.s32.f32 %v748
    %v765 = vcvt.s32.f32 %v749
    %v766 = vcvt.s32.f32 %v750
    %v767 = vcvt.s32.f32 %v751
    %v768 = vcvt.s32.f32 %v752
    %v769 = vcvt.s32.f32 %v753
    %v770 = vcvt.s32.f32 %v754
    %v771 = vcvt.s32.f32 %v755
    %v772 = vcvt.s32.f32 %v756
    %v773 = vcvt.s32.f32 %v757
    %v774 = vcvt.s32.f32 %v758
    %v775 = vcvt.s32.f32 %v759
    %v776 = vcvt.s32.f32 %v760
    %v777 = vcvt.s32.f32 %v761
    %v778 = vcvt.s32.f32 %v762
    %v779 = vcvt.s32.f32 %v763
    %v781 = vsel %vm299, %v764, 0
    %v784 = vsel %vm299, %v765, 0
    %v787 = vsel %vm299, %v766, 0
    %v790 = vsel %vm299, %v767, 0
    %v793 = vsel %vm299, %v768, 0
    %v796 = vsel %vm299, %v769, 0
    %v799 = vsel %vm299, %v770, 0
    %v802 = vsel %vm299, %v771, 0
    %v805 = vsel %vm299, %v772, 0
    %v808 = vsel %vm299, %v773, 0
    %v811 = vsel %vm299, %v774, 0
    %v814 = vsel %vm299, %v775, 0
    %v817 = vsel %vm299, %v776, 0
    %v820 = vsel %vm299, %v777, 0
    %v823 = vsel %vm299, %v778, 0
    %v826 = vsel %vm299, %v779, 0
    %828 = vmatprep.subr.mxu0 0.0
    %829 = vmatpush1.msra.mxu0 %v34
    %830 = vmatprep.subr.mxu0 0.0
    %831 = vmatpush1.msra.mxu0 %v35
    %832 = vmatprep.subr.mxu0 0.0
    %833 = vmatpush1.msra.mxu0 %v36
    %834 = vmatprep.subr.mxu0 0.0
    %835 = vmatpush1.msra.mxu0 %v37
    %836 = vmatprep.subr.mxu0 0.0
    %837 = vmatpush1.msra.mxu0 %v38
    %838 = vmatprep.subr.mxu0 0.0
    %839 = vmatpush1.msra.mxu0 %v39
    %840 = vmatprep.subr.mxu0 0.0
    %841 = vmatpush1.msra.mxu0 %v40
    %842 = vmatprep.subr.mxu0 0.0
    %843 = vmatpush1.msra.mxu0 %v41
    %844 = vmatprep.subr.mxu0 0.0
    %845 = vmatpush1.msra.mxu0 0.0
    %846 = vmatprep.subr.mxu0 0.0
    %847 = vmatpush1.msra.mxu0 0.0
    %848 = vmatprep.subr.mxu0 0.0
    %849 = vmatpush1.msra.mxu0 0.0
    %850 = vmatprep.subr.mxu0 0.0
    %851 = vmatpush1.msra.mxu0 0.0
    %852 = vmatprep.subr.mxu0 0.0
    %853 = vmatpush1.msra.mxu0 0.0
    %854 = vmatprep.subr.mxu0 0.0
    %855 = vmatpush1.msra.mxu0 0.0
    %856 = vmatprep.subr.mxu0 0.0
    %857 = vmatpush1.msra.mxu0 0.0
    %858 = vmatprep.subr.mxu0 0.0
    %859 = vmatpush1.msra.mxu0 0.0
    %860 = vmatprep.subr.mxu0 0.0
    %861 = vmatpush1.msra.mxu0 0.0
    %862 = vmatprep.subr.mxu0 0.0
    %863 = vmatpush1.msra.mxu0 0.0
    %864 = vmatprep.subr.mxu0 0.0
    %865 = vmatpush1.msra.mxu0 0.0
    %866 = vmatprep.subr.mxu0 0.0
    %867 = vmatpush1.msra.mxu0 0.0
    %868 = vmatprep.subr.mxu0 0.0
    %869 = vmatpush1.msra.mxu0 0.0
    %870 = vmatprep.subr.mxu0 0.0
    %871 = vmatpush1.msra.mxu0 0.0
    %872 = vmatprep.subr.mxu0 0.0
    %873 = vmatpush1.msra.mxu0 0.0
    %874 = vmatprep.subr.mxu0 0.0
    %875 = vmatpush1.msra.mxu0 0.0
    %876 = vmatprep.subr.mxu0 0.0
    %877 = vmatpush1.msra.mxu0 0.0
    %878 = vmatprep.subr.mxu0 0.0
    %879 = vmatpush1.msra.mxu0 0.0
    %880 = vmatprep.subr.mxu0 0.0
    %881 = vmatpush1.msra.mxu0 0.0
    %882 = vmatprep.subr.mxu0 0.0
    %883 = vmatpush1.msra.mxu0 0.0
    %884 = vmatprep.subr.mxu0 0.0
    %885 = vmatpush1.msra.mxu0 0.0
    %886 = vmatprep.subr.mxu0 0.0
    %887 = vmatpush1.msra.mxu0 0.0
    %888 = vmatprep.subr.mxu0 0.0
    %889 = vmatpush1.msra.mxu0 0.0
    %890 = vmatprep.subr.mxu0 0.0
    %891 = vmatpush1.msra.mxu0 0.0
    %892 = vmatprep.mubr.f32.mxu0 0.0
    %893 = vmatmul.mubr.f32.gmra.mrb[0].mxu0 %v781
    %v894 = vpop.f32.mrb[0].mxu0
    %v895 = vadd.f32 0.0, %v894
    %v896 = vpop.f32.mrb[0].mxu0
    %897 = vmatprep.mubr.f32.mxu0 0.0
    %898 = vmatmul.mubr.f32.gmra.mrb[0].mxu0 %v784
    %v899 = vpop.f32.mrb[0].mxu0
    %v900 = vadd.f32 0.0, %v899
    %v901 = vpop.f32.mrb[0].mxu0
    %902 = vmatprep.mubr.f32.mxu0 0.0
    %903 = vmatmul.mubr.f32.gmra.mrb[0].mxu0 %v787
    %v904 = vpop.f32.mrb[0].mxu0
    %v905 = vadd.f32 0.0, %v904
    %v906 = vpop.f32.mrb[0].mxu0
    %907 = vmatprep.mubr.f32.mxu0 0.0
    %908 = vmatmul.mubr.f32.gmra.mrb[0].mxu0 %v790
    %v909 = vpop.f32.mrb[0].mxu0
    %v910 = vadd.f32 0.0, %v909
    %v911 = vpop.f32.mrb[0].mxu0
    %912 = vmatprep.mubr.f32.mxu0 0.0
    %913 = vmatmul.mubr.f32.gmra.mrb[0].mxu0 %v793
    %v914 = vpop.f32.mrb[0].mxu0
    %v915 = vadd.f32 0.0, %v914
    %v916 = vpop.f32.mrb[0].mxu0
    %917 = vmatprep.mubr.f32.mxu0 0.0
    %918 = vmatmul.mubr.f32.gmra.mrb[0].mxu0 %v796
    %v919 = vpop.f32.mrb[0].mxu0
    %v920 = vadd.f32 0.0, %v919
    %v921 = vpop.f32.mrb[0].mxu0
    %922 = vmatprep.mubr.f32.mxu0 0.0
    %923 = vmatmul.mubr.f32.gmra.mrb[0].mxu0 %v799
    %v924 = vpop.f32.mrb[0].mxu0
    %v925 = vadd.f32 0.0, %v924
    %v926 = vpop.f32.mrb[0].mxu0
    %927 = vmatprep.mubr.f32.mxu0 0.0
    %928 = vmatmul.mubr.f32.gmra.mrb[0].mxu0 %v802
    %v929 = vpop.f32.mrb[0].mxu0
    %v930 = vadd.f32 0.0, %v929
    %v931 = vpop.f32.mrb[0].mxu0
    %932 = vmatprep.mubr.f32.mxu0 0.0
    %933 = vmatmul.mubr.f32.gmra.mrb[0].mxu0 %v805
    %v934 = vpop.f32.mrb[0].mxu0
    %v935 = vadd.f32 0.0, %v934
    %v936 = vpop.f32.mrb[0].mxu0
    %937 = vmatprep.mubr.f32.mxu0 0.0
    %938 = vmatmul.mubr.f32.gmra.mrb[0].mxu0 %v808
    %v939 = vpop.f32.mrb[0].mxu0
    %v940 = vadd.f32 0.0, %v939
    %v941 = vpop.f32.mrb[0].mxu0
    %942 = vmatprep.mubr.f32.mxu0 0.0
    %943 = vmatmul.mubr.f32.gmra.mrb[0].mxu0 %v811
    %v944 = vpop.f32.mrb[0].mxu0
    %v945 = vadd.f32 0.0, %v944
    %v946 = vpop.f32.mrb[0].mxu0
    %947 = vmatprep.mubr.f32.mxu0 0.0
    %948 = vmatmul.mubr.f32.gmra.mrb[0].mxu0 %v814
    %v949 = vpop.f32.mrb[0].mxu0
    %v950 = vadd.f32 0.0, %v949
    %v951 = vpop.f32.mrb[0].mxu0
    %952 = vmatprep.mubr.f32.mxu0 0.0
    %953 = vmatmul.mubr.f32.gmra.mrb[0].mxu0 %v817
    %v954 = vpop.f32.mrb[0].mxu0
    %v955 = vadd.f32 0.0, %v954
    %v956 = vpop.f32.mrb[0].mxu0
    %957 = vmatprep.mubr.f32.mxu0 0.0
    %958 = vmatmul.mubr.f32.gmra.mrb[0].mxu0 %v820
    %v959 = vpop.f32.mrb[0].mxu0
    %v960 = vadd.f32 0.0, %v959
    %v961 = vpop.f32.mrb[0].mxu0
    %962 = vmatprep.mubr.f32.mxu0 0.0
    %963 = vmatmul.mubr.f32.gmra.mrb[0].mxu0 %v823
    %v964 = vpop.f32.mrb[0].mxu0
    %v965 = vadd.f32 0.0, %v964
    %v966 = vpop.f32.mrb[0].mxu0
    %967 = vmatprep.mubr.f32.mxu0 0.0
    %968 = vmatmul.mubr.f32.gmra.mrb[0].mxu0 %v826
    %v969 = vpop.f32.mrb[0].mxu0
    %v970 = vadd.f32 0.0, %v969
    %v971 = vpop.f32.mrb[0].mxu0
    %972 = vdwg.mxu0
    %973 = vst.msk [vmem:[#allocation4] sm:$0xff] %vm43, %v895
    %974 = vst.msk [vmem:[#allocation4 + $0x8] sm:$0xff] %vm43, %v900
    %975 = vst.msk [vmem:[#allocation4 + $0x10] sm:$0xff] %vm43, %v905
    %976 = vst.msk [vmem:[#allocation4 + $0x18] sm:$0xff] %vm43, %v910
    %977 = vst.msk [vmem:[#allocation4 + $0x20] sm:$0xff] %vm43, %v915
    %978 = vst.msk [vmem:[#allocation4 + $0x28] sm:$0xff] %vm43, %v920
    %979 = vst.msk [vmem:[#allocation4 + $0x30] sm:$0xff] %vm43, %v925
    %980 = vst.msk [vmem:[#allocation4 + $0x38] sm:$0xff] %vm43, %v930
    %981 = vst.msk [vmem:[#allocation4 + $0x40] sm:$0xff] %vm43, %v935
    %982 = vst.msk [vmem:[#allocation4 + $0x48] sm:$0xff] %vm43, %v940
    %983 = vst.msk [vmem:[#allocation4 + $0x50] sm:$0xff] %vm43, %v945
    %984 = vst.msk [vmem:[#allocation4 + $0x58] sm:$0xff] %vm43, %v950
    %985 = vst.msk [vmem:[#allocation4 + $0x60] sm:$0xff] %vm43, %v955
    %986 = vst.msk [vmem:[#allocation4 + $0x68] sm:$0xff] %vm43, %v960
    %987 = vst.msk [vmem:[#allocation4 + $0x70] sm:$0xff] %vm43, %v965
    %988 = vst.msk [vmem:[#allocation4 + $0x78] sm:$0xff] %vm43, %v970
    // Predicated region
    $region14: #{tpu_custom_call.1} parent=1 // pred_check
      _
    $region15: #{tpu_custom_call.1} parent=1 // pred_check_branch
      %990 = sbr.rel (0) target = $region17
    $region16: #{tpu_custom_call.1} parent=1 // pred_region
      %s992 = ssub.s32 16, 16
      %993 = vsyncadd [#allocation3], %s992
      %s995 = sshll.u32 [#allocation2], 4
      %s996 = int_to_ptr.vmem [resolvable:$true] %s995
      %998 = dma.vmem_to_hbm [thread:$0]  %s996, 16, %s3, [#allocation3]
    $region17: #{tpu_custom_call.1} parent=1 // pred_fallthru
      _
    // Predicated region
    $region18: #{tpu_custom_call.1} parent=1 // pred_check
      _
    $region19: #{tpu_custom_call.1} parent=1 // pred_check_branch
      %1000 = sbr.rel (0) target = $region21
    $region20: #{tpu_custom_call.1} parent=1 // pred_region
      %s1002 = ssub.s32 2048, 256
      %1003 = vsyncadd [#allocation5], %s1002
      %s1004 = sshll.u32 [#allocation4], 4
      %s1005 = int_to_ptr.vmem [resolvable:$true] %s1004
      %1010 = dma.vmem_to_hbm [thread:$0]  %s1005, 256, %s4, [#allocation5], 128, 128, 8
    $region21: #{tpu_custom_call.1} parent=1 // pred_fallthru
      _
    // Predicated region
    $region22: #{tpu_custom_call.1} parent=1 // pred_check
      _
    $region23: #{tpu_custom_call.1} parent=1 // pred_check_branch
      %1012 = sbr.rel (0) target = $region25
    $region24: #{tpu_custom_call.1} parent=1 // pred_region
      %1013 = dma.done [#allocation3], 16
    $region25: #{tpu_custom_call.1} parent=1 // pred_fallthru
      _
    // Predicated region
    $region26: #{tpu_custom_call.1} parent=1 // pred_check
      _
    $region27: #{tpu_custom_call.1} parent=1 // pred_check_branch
      %1015 = sbr.rel (0) target = $region29
    $region28: #{tpu_custom_call.1} parent=1 // pred_region
      %1016 = dma.done [#allocation5], 2048
    $region29: #{tpu_custom_call.1} parent=1 // pred_fallthru
      _
    %1017 = vsyncpa [#allocation3], 1
    %1018 = vsyncpa [#allocation5], 1

</llo_original>
